<compile_context>
chip_gen: v7x
topology: tpu7x:2x2x1
jax: 0.10.0
libtpu: 0.0.40
codegen_flags: <defaults>
</compile_context>

<pallas_src>
import functools

import jax
import jax.numpy as jnp
from jax.experimental import pallas as pl
from jax.experimental.pallas import tpu as pltpu


def _round_up(x, m):
    return ((x + m - 1) // m) * m


def _patch_embed_kernel_single(x_ref, w_ref, scale_ref, shift_ref, o_ref):
    # x_ref: (K, tq) bf16 K-major patches, w_ref: (N, K) bf16,
    # scale/shift: (N, 1) f32, o_ref: (N, tq).
    acc = jnp.dot(w_ref[...], x_ref[...], preferred_element_type=jnp.float32)
    o_ref[...] = (acc * scale_ref[...] + shift_ref[...]).astype(o_ref.dtype)


def _patch_embed_kernel_multi(x_ref, w_ref, scale_ref, shift_ref, o_ref,
                              acc_ref):
    # Tiled-K fallback (K very large): f32 accumulator in VMEM scratch.
    k = pl.program_id(2)
    part = jnp.dot(w_ref[...], x_ref[...], preferred_element_type=jnp.float32)

    @pl.when(k == 0)
    def _():
        acc_ref[...] = part

    @pl.when(k > 0)
    def _():
        acc_ref[...] += part

    @pl.when(k == pl.num_programs(2) - 1)
    def _():
        o_ref[...] = (acc_ref[...] * scale_ref[...]
                      + shift_ref[...]).astype(o_ref.dtype)


def patch_embedding(x, conv_w, conv_b, bn_gamma, bn_beta, bn_mean, bn_var,
                    *, patch_size, stride, padding=0, eps=1e-5,
                    out_dtype=None):
    """Conv2d(kernel=patch, stride=patch, padding) + BatchNorm2d (eval mode)."""
    assert patch_size == stride, "patch embedding assumes kernel_size == stride"
    B, C, H, W = x.shape
    N_out, C_w, ph, pw = conv_w.shape
    assert C_w == C
    out_dtype = out_dtype or x.dtype
    out_bytes = int(jnp.dtype(out_dtype).itemsize)

    # Spatial padding / PyTorch-style floor truncation (plain-JAX glue).
    if padding:
        x = jnp.pad(x, ((0, 0), (0, 0), (padding, padding), (padding, padding)))
    Hp, Wp = x.shape[2], x.shape[3]
    HP, WP = Hp // ph, Wp // pw
    if HP * ph != Hp or WP * pw != Wp:
        x = x[:, :, :HP * ph, :WP * pw]

    S = HP * WP            # spatial positions per batch (output lane dim)
    K = C * ph * pw        # contraction depth

    # Patch extraction to K-major [B, K, S] in bf16 (halves glue HBM traffic).
    # K ordering (c, i, j) matches PyTorch Conv2d weight layout.
    # TODO(synk): fold this gather into the kernel to remove this HBM pass.
    xb = x.astype(jnp.bfloat16).reshape(B, C, HP, ph, WP, pw)
    xp = jnp.transpose(xb, (0, 1, 3, 5, 2, 4)).reshape(B, K, S)

    # Conv weight flattened to [N, K] (no transpose needed in this layout).
    w_flat = conv_w.reshape(N_out, K).astype(jnp.bfloat16)

    # Fold conv bias + inference-mode BatchNorm into per-channel scale/shift:
    #   bn(Wx + b) = (Wx)*s + (b*s + beta - mean*s),  s = gamma / sqrt(var+eps)
    scale = bn_gamma / jnp.sqrt(bn_var + eps)
    shift = conv_b * scale + bn_beta - bn_mean * scale

    # N is the sublane dim of the output tile -> only 8-granular padding needed
    # (typical embed dims need none, so no output slice pass).
    N_pad = _round_up(N_out, 8)
    if N_pad != N_out:
        w_flat = jnp.pad(w_flat, ((0, N_pad - N_out), (0, 0)))
        scale = jnp.pad(scale, (0, N_pad - N_out))
        shift = jnp.pad(shift, (0, N_pad - N_out))
    scale2d = scale.reshape(N_pad, 1).astype(jnp.float32)
    shift2d = shift.reshape(N_pad, 1).astype(jnp.float32)

    # Spatial tile (output lane dim): whole-S per batch when small enough
    # (full-dim block, no padding/slicing), else 1024-wide tiles.
    if S <= 2048:
        tq, S_pad = S, S
    else:
        tq = 1024
        S_pad = _round_up(S, tq)
    if S_pad != S:
        xp = jnp.pad(xp, ((0, 0), (0, 0), (0, S_pad - S)))
    num_q = S_pad // tq

    # K tiling: keep the whole contraction resident (single grid step, no
    # accumulator scratch, weight fetched once) unless the x tile gets large.
    single_k = (K <= 4096) and (K * tq * 2 <= (8 << 20))
    if single_k:
        tk, K_pad = K, K
        num_k = 1
    else:
        tk = 512
        K_pad = _round_up(K, tk)
        xp = jnp.pad(xp, ((0, 0), (0, K_pad - K), (0, 0)))
        w_flat = jnp.pad(w_flat, ((0, 0), (0, K_pad - K)))
        num_k = K_pad // tk

    # Cost estimate (counts weight re-streaming per (b, q) in the tiled-K path).
    w_streams = 1 if single_k else B * num_q
    cost = pl.CostEstimate(
        flops=2 * B * S_pad * K_pad * N_pad,
        transcendentals=0,
        bytes_accessed=int(B * K_pad * S_pad * 2
                           + w_streams * K_pad * N_pad * 2
                           + 2 * N_pad * 4
                           + B * N_pad * S_pad * out_bytes),
    )

    # VMEM budget: double-buffered x / weight / output + f32 accumulator.
    est_vmem = (2 * tk * tq * 2 + 2 * N_pad * tk * 2
                + 2 * N_pad * tq * out_bytes + N_pad * tq * 4 + (1 << 20))
    vmem_limit = int(min(max(2 * est_vmem, 32 << 20), 64 << 20))

    if single_k:
        out = pl.pallas_call(
            _patch_embed_kernel_single,
            out_shape=jax.ShapeDtypeStruct((B, N_pad, S_pad), out_dtype),
            grid=(B, num_q),
            in_specs=[
                pl.BlockSpec((None, K_pad, tq), lambda b, q: (b, 0, q)),
                pl.BlockSpec((N_pad, K_pad), lambda b, q: (0, 0)),
                pl.BlockSpec((N_pad, 1), lambda b, q: (0, 0)),
                pl.BlockSpec((N_pad, 1), lambda b, q: (0, 0)),
            ],
            out_specs=pl.BlockSpec((None, N_pad, tq), lambda b, q: (b, 0, q)),
            compiler_params=pltpu.CompilerParams(
                dimension_semantics=("parallel", "parallel"),
                vmem_limit_bytes=vmem_limit),
            cost_estimate=cost,
        )(xp, w_flat, scale2d, shift2d)
    else:
        out = pl.pallas_call(
            _patch_embed_kernel_multi,
            out_shape=jax.ShapeDtypeStruct((B, N_pad, S_pad), out_dtype),
            grid=(B, num_q, num_k),
            in_specs=[
                pl.BlockSpec((None, tk, tq), lambda b, q, k: (b, k, q)),
                pl.BlockSpec((N_pad, tk), lambda b, q, k: (0, k)),
                pl.BlockSpec((N_pad, 1), lambda b, q, k: (0, 0)),
                pl.BlockSpec((N_pad, 1), lambda b, q, k: (0, 0)),
            ],
            out_specs=pl.BlockSpec((None, N_pad, tq),
                                   lambda b, q, k: (b, 0, q)),
            scratch_shapes=[pltpu.VMEM((N_pad, tq), jnp.float32)],
            compiler_params=pltpu.CompilerParams(
                dimension_semantics=("parallel", "parallel", "arbitrary"),
                vmem_limit_bytes=vmem_limit),
            cost_estimate=cost,
        )(xp, w_flat, scale2d, shift2d)

    # Drop (rare) row / column padding; free reshape to NCHW (no transpose).
    if N_pad != N_out or S_pad != S:
        out = out[:, :N_out, :S]
    return out.reshape(B, N_out, HP, WP)


def _reference(x, conv_w, conv_b, g, b, mean, var, *, patch, pad, eps=1e-5):
    # Pure-JAX f32 reference (conv via einsum over extracted patches).
    B, C, H, W = x.shape
    N, _, ph, pw = conv_w.shape
    if pad:
        x = jnp.pad(x, ((0, 0), (0, 0), (pad, pad), (pad, pad)))
    HP, WP = x.shape[2] // ph, x.shape[3] // pw
    xp = x.reshape(B, C, HP, ph, WP, pw).transpose(0, 2, 4, 1, 3, 5)
    xp = xp.reshape(B, HP, WP, C * ph * pw)
    y = (jnp.einsum("bhwk,nk->bnhw", xp, conv_w.reshape(N, -1))
         + conv_b[None, :, None, None])
    s = g / jnp.sqrt(var + eps)
    return y * s[None, :, None, None] + (b - mean * s)[None, :, None, None]


if __name__ == "__main__":
    # Small shapes consistent with the module (scaled-down patch embed).
    B, C, H, W = 2, 4, 16, 16
    patch = 4
    stride = 4
    pad = 0
    embed_dim = 32

    key = jax.random.PRNGKey(0)
    k1, k2, k3, k4, k5, k6, k7 = jax.random.split(key, 7)
    x = jax.random.normal(k1, (B, C, H, W), jnp.float32)
    conv_w = jax.random.normal(k2, (embed_dim, C, patch, patch), jnp.float32) * 0.05
    conv_b = jax.random.normal(k3, (embed_dim,), jnp.float32) * 0.05
    # BatchNorm2d parameters / running stats (inference mode).
    bn_gamma = 1.0 + 0.1 * jax.random.normal(k4, (embed_dim,), jnp.float32)
    bn_beta = 0.1 * jax.random.normal(k5, (embed_dim,), jnp.float32)
    bn_mean = 0.1 * jax.random.normal(k6, (embed_dim,), jnp.float32)
    bn_var = 1.0 + 0.1 * jax.nn.softplus(
        jax.random.normal(k7, (embed_dim,), jnp.float32))

    fn = functools.partial(patch_embedding, patch_size=patch, stride=stride,
                           padding=pad)
    out = jax.block_until_ready(
        fn(x, conv_w, conv_b, bn_gamma, bn_beta, bn_mean, bn_var))

    ref = _reference(x, conv_w, conv_b, bn_gamma, bn_beta, bn_mean, bn_var,
                     patch=patch, pad=pad)

    assert out.shape == (B, embed_dim, H // stride, W // stride), out.shape
    # bf16 operands with f32 accumulation -> looser tolerance than all-f32.
    assert jnp.allclose(out, ref, atol=3e-2, rtol=3e-2), \
        float(jnp.max(jnp.abs(out - ref)))
    print("KERNEL_OK")
</pallas_src>

<mosaic_0001>
module attributes {stable_mosaic.version = 11 : i64} {
  func.func @_patch_embed_kernel_single(%arg0: i32, %arg1: i32, %arg2: memref<1x64x16xbf16, #tpu.memory_space<vmem>>, %arg3: memref<32x64xbf16, #tpu.memory_space<vmem>>, %arg4: memref<32x1xf32, #tpu.memory_space<vmem>>, %arg5: memref<32x1xf32, #tpu.memory_space<vmem>>, %arg6: memref<1x32x16xf32, #tpu.memory_space<vmem>>) attributes {dimension_semantics = [#tpu.dimension_semantics<parallel>, #tpu.dimension_semantics<parallel>], iteration_bounds = array<i64: 2, 1>, scalar_prefetch = 0 : i64, scratch_operands = 0 : i64, tpu.core_type = #tpu.core_type<tc>, window_params = [{transform_indices = @transform_0, window_bounds = array<i64: 1, 64, 16>}, {pipeline_mode = #tpu.pipeline_mode<synchronous>, transform_indices = @transform_1, window_bounds = array<i64: 32, 64>}, {pipeline_mode = #tpu.pipeline_mode<synchronous>, transform_indices = @transform_2, window_bounds = array<i64: 32, 1>}, {pipeline_mode = #tpu.pipeline_mode<synchronous>, transform_indices = @transform_3, window_bounds = array<i64: 32, 1>}, {transform_indices = @transform_4, window_bounds = array<i64: 1, 32, 16>}]} {
    %c0 = arith.constant 0 : index
    %c0_0 = arith.constant 0 : index
    %0 = vector.load %arg3[%c0, %c0_0] : memref<32x64xbf16, #tpu.memory_space<vmem>>, vector<32x64xbf16>
    %c0_1 = arith.constant 0 : index
    %c0_2 = arith.constant 0 : index
    %c0_3 = arith.constant 0 : index
    %1 = vector.load %arg2[%c0_1, %c0_2, %c0_3] : memref<1x64x16xbf16, #tpu.memory_space<vmem>>, vector<1x64x16xbf16>
    %2 = vector.shape_cast %1 : vector<1x64x16xbf16> to vector<64x16xbf16>
    %cst = arith.constant dense<0.000000e+00> : vector<32x16xf32>
    %3 = tpu.matmul %0, %2, %cst {dimension_numbers = #tpu.dot_dimension_numbers<[1], [0], [0], [1], [0, 0, 1, 1], [], []>} : vector<32x64xbf16>, vector<64x16xbf16>, vector<32x16xf32> -> vector<32x16xf32>
    %c0_4 = arith.constant 0 : index
    %c0_5 = arith.constant 0 : index
    %4 = vector.load %arg4[%c0_4, %c0_5] : memref<32x1xf32, #tpu.memory_space<vmem>>, vector<32x1xf32>
    %5 = vector.broadcast %4 : vector<32x1xf32> to vector<32x16xf32>
    %6 = arith.mulf %3, %5 : vector<32x16xf32>
    %c0_6 = arith.constant 0 : index
    %c0_7 = arith.constant 0 : index
    %7 = vector.load %arg5[%c0_6, %c0_7] : memref<32x1xf32, #tpu.memory_space<vmem>>, vector<32x1xf32>
    %8 = vector.broadcast %7 : vector<32x1xf32> to vector<32x16xf32>
    %9 = arith.addf %6, %8 : vector<32x16xf32>
    %c0_8 = arith.constant 0 : index
    %c0_9 = arith.constant 0 : index
    %c0_10 = arith.constant 0 : index
    %10 = vector.load %arg6[%c0_8, %c0_9, %c0_10] : memref<1x32x16xf32, #tpu.memory_space<vmem>>, vector<1x32x16xf32>
    %11 = vector.shape_cast %10 : vector<1x32x16xf32> to vector<32x16xf32>
    %12 = vector.shape_cast %9 : vector<32x16xf32> to vector<1x32x16xf32>
    tpu.vector_store %arg6[%c0_8, %c0_9, %c0_10], %12 {strides = array<i32>} : memref<1x32x16xf32, #tpu.memory_space<vmem>>, vector<1x32x16xf32>,
    return
  }
  func.func @transform_0(%arg0: i32, %arg1: i32) -> (i32, i32, i32) {
    %c0_i32 = arith.constant 0 : i32
    %c0_i32_0 = arith.constant 0 : i32
    return %arg0, %c0_i32, %arg1 : i32, i32, i32
  }
  func.func @transform_1(%arg0: i32, %arg1: i32) -> (i32, i32) {
    %c0_i32 = arith.constant 0 : i32
    %c0_i32_0 = arith.constant 0 : i32
    %c0_i32_1 = arith.constant 0 : i32
    return %c0_i32, %c0_i32_0 : i32, i32
  }
  func.func @transform_2(%arg0: i32, %arg1: i32) -> (i32, i32) {
    %c0_i32 = arith.constant 0 : i32
    %c0_i32_0 = arith.constant 0 : i32
    %c0_i32_1 = arith.constant 0 : i32
    return %c0_i32, %c0_i32_0 : i32, i32
  }
  func.func @transform_3(%arg0: i32, %arg1: i32) -> (i32, i32) {
    %c0_i32 = arith.constant 0 : i32
    %c0_i32_0 = arith.constant 0 : i32
    %c0_i32_1 = arith.constant 0 : i32
    return %c0_i32, %c0_i32_0 : i32, i32
  }
  func.func @transform_4(%arg0: i32, %arg1: i32) -> (i32, i32, i32) {
    %c0_i32 = arith.constant 0 : i32
    %c0_i32_0 = arith.constant 0 : i32
    return %arg0, %c0_i32, %arg1 : i32, i32, i32
  }
}

</mosaic_0001>

<llo_original>
// kernel: tpu_custom_call.1
$region0: #{tpu_custom_call.1}
  #allocation0 [shape = 'u32[]', space=smem, size = 0x4, offset = 0x4, fixed_abs, tag = 'smem constant byte address 0x4 - core index']
  #allocation1 [shape = 'u32[144,128]{1,0:T(1,128)}', space=vmem, size = 0x12000, scoped, tag = 'internal scratch']
  %s0 = inlined_call_operand.vmem [shape: bf16[2,64,16], index: 0, kind: input, shape index: {}]
  %s1 = inlined_call_operand.vmem [shape: bf16[32,64], index: 1, kind: input, shape index: {}]
  %s2 = inlined_call_operand.vmem [shape: f32[32,1], index: 2, kind: input, shape index: {}]
  %s3 = inlined_call_operand.vmem [shape: f32[32,1], index: 3, kind: input, shape index: {}]
  %s4 = inlined_call_operand.vmem [shape: f32[2,32,16], index: 4, kind: output, shape index: {}]
  %s5 = sld [smem:[#allocation0]]
  $region49: #{tpu_custom_call.1} parent=0
    _
  %s7 = ssub.s32 1, %s5
  %s8 = scalar_select 0, %s7, %s5
  loop: start=0, step=1, limit=4
  $region2: #{tpu_custom_call.1} parent=0 // loop_pre_header
    _
  $region3: #{tpu_custom_call.1} parent=0 // loop_header
    %s10 = sphi 0, %s14
    %p11 = scmp.ge.s32.totalorder %s10, 4
    %s17 = sphi 0, %s29
    %s18 = sphi 0, %s25
    %s19 = sphi 0, %s17
    %s20 = sphi 0, %s18
    %s21 = sphi 0, %s19
    %s22 = sphi 0, %s20
    %s34 = sphi 0, %s36
    %s37 = sphi 0, %s34
    %s38 = sphi 0, %s37
    %s54 = sphi 0, %s38
    %s58 = sphi 0, %s58
    %s60 = sphi 0, %s58
    %s61 = sphi 0, %s60
    %s75 = sphi 0, %s61
    %s79 = sphi 0, %s79
    %s81 = sphi 0, %s79
    %s82 = sphi 0, %s81
    %s96 = sphi 0, %s82
    %s100 = sphi 0, %s100
    %s102 = sphi 0, %s100
    %s103 = sphi 0, %s102
    %s117 = sphi 0, %s103
    %s125 = sphi 0, %s127
    %s128 = sphi 0, %s125
    %s129 = sphi 0, %s128
    %s145 = sphi 0, %s129
  $region4: #{tpu_custom_call.1} parent=0 // loop_header_branch
    %13 = sbr.rel (%p11) target = $region8
  $region5: #{tpu_custom_call.1} parent=0 // loop_body
    %s15 = ssub.s32 %s10, 1
    %s16 = ssub.s32 %s10, 2
    %s23 = sadd.s32 1, %s18
    %p24 = scmp.ge.s32.totalorder %s23, 1
    %s25 = scalar_select %p24, 0, %s23
    %s26 = sadd.s32 1, %s17
    %s27 = scalar_select %p24, %s26, %s17
    %p28 = scmp.ge.s32.totalorder %s27, 2
    %s29 = scalar_select %p28, 0, %s27
    %s30 = ssub.s32 %s17, %s29
    %s31 = ssub.s32 %s18, %s25
    %s32 = sor.u32 %s30, %s31
    %p33 = scmp.eq.s32.totalorder %s32, 0
    %s35 = sadd.s32 %s34, 1
    %s36 = scalar_select %p33, %s34, %s35
    %p39 = pneg %p33
    %p40 = scmp.eq.s32.totalorder %s10, 1
    %p41 = por %p39, %p40
    %p42 = scmp.ne.s32.totalorder %s34, %s37
    %p43 = scmp.eq.s32.totalorder %s10, 0
    %p44 = por %p42, %p43
    %p45 = scmp.ne.s32.totalorder %s34, %s37
    %p46 = scmp.eq.s32.totalorder %s15, 1
    %p47 = por %p45, %p46
    %p48 = scmp.ne.s32.totalorder %s37, %s38
    %p49 = scmp.eq.s32.totalorder %s15, 0
    %p50 = por %p48, %p49
    %p51 = scmp.ne.s32.totalorder %s37, %s38
    %p52 = scmp.eq.s32.totalorder %s16, 1
    %p53 = por %p51, %p52
    %p55 = scmp.ne.s32.totalorder %s38, %s54
    %p56 = scmp.eq.s32.totalorder %s16, 0
    %p57 = por %p55, %p56
    %s59 = sadd.s32 %s58, 1
    %p62 = scmp.eq.s32.totalorder %s10, 1
    %p63 = scmp.ne.s32.totalorder %s58, %s60
    %p64 = scmp.eq.s32.totalorder %s10, 0
    %p65 = por %p63, %p64
    %p66 = scmp.ne.s32.totalorder %s58, %s60
    %p67 = scmp.eq.s32.totalorder %s15, 1
    %p68 = por %p66, %p67
    %p69 = scmp.ne.s32.totalorder %s60, %s61
    %p70 = scmp.eq.s32.totalorder %s15, 0
    %p71 = por %p69, %p70
    %p72 = scmp.ne.s32.totalorder %s60, %s61
    %p73 = scmp.eq.s32.totalorder %s16, 1
    %p74 = por %p72, %p73
    %p76 = scmp.ne.s32.totalorder %s61, %s75
    %p77 = scmp.eq.s32.totalorder %s16, 0
    %p78 = por %p76, %p77
    %s80 = sadd.s32 %s79, 1
    %p83 = scmp.eq.s32.totalorder %s10, 1
    %p84 = scmp.ne.s32.totalorder %s79, %s81
    %p85 = scmp.eq.s32.totalorder %s10, 0
    %p86 = por %p84, %p85
    %p87 = scmp.ne.s32.totalorder %s79, %s81
    %p88 = scmp.eq.s32.totalorder %s15, 1
    %p89 = por %p87, %p88
    %p90 = scmp.ne.s32.totalorder %s81, %s82
    %p91 = scmp.eq.s32.totalorder %s15, 0
    %p92 = por %p90, %p91
    %p93 = scmp.ne.s32.totalorder %s81, %s82
    %p94 = scmp.eq.s32.totalorder %s16, 1
    %p95 = por %p93, %p94
    %p97 = scmp.ne.s32.totalorder %s82, %s96
    %p98 = scmp.eq.s32.totalorder %s16, 0
    %p99 = por %p97, %p98
    %s101 = sadd.s32 %s100, 1
    %p104 = scmp.eq.s32.totalorder %s10, 1
    %p105 = scmp.ne.s32.totalorder %s100, %s102
    %p106 = scmp.eq.s32.totalorder %s10, 0
    %p107 = por %p105, %p106
    %p108 = scmp.ne.s32.totalorder %s100, %s102
    %p109 = scmp.eq.s32.totalorder %s15, 1
    %p110 = por %p108, %p109
    %p111 = scmp.ne.s32.totalorder %s102, %s103
    %p112 = scmp.eq.s32.totalorder %s15, 0
    %p113 = por %p111, %p112
    %p114 = scmp.ne.s32.totalorder %s102, %s103
    %p115 = scmp.eq.s32.totalorder %s16, 1
    %p116 = por %p114, %p115
    %p118 = scmp.ne.s32.totalorder %s103, %s117
    %p119 = scmp.eq.s32.totalorder %s16, 0
    %p120 = por %p118, %p119
    %s121 = ssub.s32 %s17, %s29
    %s122 = ssub.s32 %s18, %s25
    %s123 = sor.u32 %s121, %s122
    %p124 = scmp.eq.s32.totalorder %s123, 0
    %s126 = sadd.s32 %s125, 1
    %s127 = scalar_select %p124, %s125, %s126
    %p130 = pneg %p124
    %p131 = scmp.eq.s32.totalorder %s10, 1
    %p132 = por %p130, %p131
    %p133 = scmp.ne.s32.totalorder %s125, %s128
    %p134 = scmp.eq.s32.totalorder %s10, 0
    %p135 = por %p133, %p134
    %p136 = scmp.ne.s32.totalorder %s125, %s128
    %p137 = scmp.eq.s32.totalorder %s15, 1
    %p138 = por %p136, %p137
    %p139 = scmp.ne.s32.totalorder %s128, %s129
    %p140 = scmp.eq.s32.totalorder %s15, 0
    %p141 = por %p139, %p140
    %p142 = scmp.ne.s32.totalorder %s128, %s129
    %p143 = scmp.eq.s32.totalorder %s16, 1
    %p144 = por %p142, %p143
    %p146 = scmp.ne.s32.totalorder %s129, %s145
    %p147 = scmp.eq.s32.totalorder %s16, 0
    %p148 = por %p146, %p147
    %p149 = scmp.le.s32.totalorder 1, %s10
    %p150 = scmp.lt.s32.totalorder %s10, 3
    %p151 = pnand %p149, %p150
    %p152 = pneg %p151
    // Predicated region
    $region9: #{tpu_custom_call.1} parent=5 // pred_check
      _
    $region10: #{tpu_custom_call.1} parent=5 // pred_check_branch
      %154 = sbr.rel (%p151) target = $region12
    $region11: #{tpu_custom_call.1} parent=5 // pred_region
      %s155 = ssub.s32 %s10, 1
      // Predicated region
      $region13: #{tpu_custom_call.1} parent=11 // pred_check
        %p156 = pneg %p71
      $region14: #{tpu_custom_call.1} parent=11 // pred_check_branch
        %158 = sbr.rel (%p156) target = $region16
      $region15: #{tpu_custom_call.1} parent=11 // pred_region
        _
      $region16: #{tpu_custom_call.1} parent=11 // pred_fallthru
        _
      // Predicated region
      $region17: #{tpu_custom_call.1} parent=11 // pred_check
        %p159 = pneg %p92
      $region18: #{tpu_custom_call.1} parent=11 // pred_check_branch
        %161 = sbr.rel (%p159) target = $region20
      $region19: #{tpu_custom_call.1} parent=11 // pred_region
        _
      $region20: #{tpu_custom_call.1} parent=11 // pred_fallthru
        _
      // Predicated region
      $region21: #{tpu_custom_call.1} parent=11 // pred_check
        %p162 = pneg %p113
      $region22: #{tpu_custom_call.1} parent=11 // pred_check_branch
        %164 = sbr.rel (%p162) target = $region24
      $region23: #{tpu_custom_call.1} parent=11 // pred_region
        _
      $region24: #{tpu_custom_call.1} parent=11 // pred_fallthru
        _
    $region12: #{tpu_custom_call.1} parent=5 // pred_fallthru
      _
    %p165 = scmp.lt.s32.totalorder %s10, 2
    // Predicated region
    $region25: #{tpu_custom_call.1} parent=5 // pred_check
      %p166 = pneg %p165
    $region26: #{tpu_custom_call.1} parent=5 // pred_check_branch
      %168 = sbr.rel (%p166) target = $region28
    $region27: #{tpu_custom_call.1} parent=5 // pred_region
      // Predicated region
      $region29: #{tpu_custom_call.1} parent=27 // pred_check
        %p169 = pneg %p44
      $region30: #{tpu_custom_call.1} parent=27 // pred_check_branch
        %171 = sbr.rel (%p169) target = $region32
      $region31: #{tpu_custom_call.1} parent=27 // pred_region
        %p172 = scmp.lt.s32.totalorder %s17, 1
        %s173 = scalar_select %p172, %s17, 1
        %p174 = scmp.lt.s32.totalorder %s18, 0
        %s175 = scalar_select %p174, %s18, 0
        %s176 = smul.addr %s173, 8
        %s177 = sadd.s32 %s175, %s176
        %s178 = smul.addr %s177, 4
        %s179 = scalar_lea.vmem %s0, %s178
      $region32: #{tpu_custom_call.1} parent=27 // pred_fallthru
        _
    $region28: #{tpu_custom_call.1} parent=5 // pred_fallthru
      _
    %p180 = scmp.le.s32.totalorder 1, %s10
    %p181 = scmp.lt.s32.totalorder %s10, 3
    %p182 = pnand %p180, %p181
    %p183 = pneg %p182
    // Predicated region
    $region33: #{tpu_custom_call.1} parent=5 // pred_check
      _
    $region34: #{tpu_custom_call.1} parent=5 // pred_check_branch
      %185 = sbr.rel (%p182) target = $region36
    $region35: #{tpu_custom_call.1} parent=5 // pred_region
      %s186 = ssub.s32 %s10, 1
      %p187 = scmp.lt.s32.totalorder %s19, 1
      %s188 = scalar_select %p187, %s19, 1
      %p189 = scmp.lt.s32.totalorder %s20, 0
      %s190 = scalar_select %p189, %s20, 0
      %s191 = smul.addr %s188, 8
      %s192 = sadd.s32 %s190, %s191
      %s193 = smul.addr %s192, 4
      %s194 = scalar_lea.vmem %s0, %s193
      %p195 = pneg %p50
      %p196 = pneg %p47
      %p197 = pneg %p71
      %p198 = pneg %p68
      %p199 = pneg %p92
      %p200 = pneg %p89
      %p201 = pneg %p113
      %p202 = pneg %p110
      %p203 = pneg %p141
      %p204 = pneg %p138
      %p205 = scmp.lt.s32.totalorder %s19, 1
      %s206 = scalar_select %p205, %s19, 1
      %p207 = scmp.lt.s32.totalorder %s20, 0
      %s208 = scalar_select %p207, %s20, 0
      %s209 = smul.addr %s206, 4
      %s210 = sadd.s32 %s208, %s209
      %s211 = smul.addr %s210, 8
      %s212 = scalar_lea.vmem %s4, %s211
      %p213 = scmp.lt.s32.totalorder %s19, 1
      %s214 = scalar_select %p213, %s19, 1
      %p215 = scmp.lt.s32.totalorder %s20, 0
      %s216 = scalar_select %p215, %s20, 0
      %s217 = smul.addr %s214, 8
      %s218 = sadd.s32 %s216, %s217
      %s219 = smul.addr %s218, 4
      %s220 = scalar_lea.vmem %s0, %s219
      %p221 = scmp.lt.s32.totalorder %s19, 1
      %s222 = scalar_select %p221, %s19, 1
      %p223 = scmp.lt.s32.totalorder %s20, 0
      %s224 = scalar_select %p223, %s20, 0
      %s225 = smul.addr %s222, 4
      %s226 = sadd.s32 %s224, %s225
      %s227 = smul.addr %s226, 8
      %s228 = scalar_lea.vmem %s4, %s227
      %v230 = vld [vmem:[%s1] sm:$0xf]
      %v231 = vld [vmem:[%s1 + $0x4] sm:$0xf]
      %v232 = vld [vmem:[%s1 + $0x8] sm:$0xf]
      %v233 = vld [vmem:[%s1 + $0xc] sm:$0xf]
      %v234 = vld [vmem:[%s220] sm:$0xf]
      %v235 = vld [vmem:[%s220 + $0x4] sm:$0xf]
      %v236 = vld [vmem:[%s220 + $0x8] sm:$0xf]
      %v237 = vld [vmem:[%s220 + $0xc] sm:$0xf]
      %v238 = vld [vmem:[%s220 + $0x10] sm:$0xf]
      %v239 = vld [vmem:[%s220 + $0x14] sm:$0xf]
      %v240 = vld [vmem:[%s220 + $0x18] sm:$0xf]
      %v241 = vld [vmem:[%s220 + $0x1c] sm:$0xf]
      %v246 = vunpack.c.l.b16 %v230
      %v247 = vunpack.c.l.b16 %v231
      %v248 = vunpack.c.l.b16 %v232
      %v249 = vunpack.c.l.b16 %v233
      %v250 = vpack.c.b16 %v247, %v246
      %v251 = vpack.c.b16 %v249, %v248
      %v260 = vunpack.c.l.b16 %v234
      %v261 = vunpack.c.l.b16 %v235
      %v262 = vunpack.c.l.b16 %v236
      %v263 = vunpack.c.l.b16 %v237
      %v264 = vunpack.c.l.b16 %v238
      %v265 = vunpack.c.l.b16 %v239
      %v266 = vunpack.c.l.b16 %v240
      %v267 = vunpack.c.l.b16 %v241
      %v268 = vpack.c.b16 %v261, %v260
      %v269 = vpack.c.b16 %v263, %v262
      %v270 = vpack.c.b16 %v265, %v264
      %v271 = vpack.c.b16 %v267, %v266
      %vm276 = vcmask 523264
      %v278 = vsel %vm276, %v250, 0
      %v281 = vsel %vm276, %v251, 0
      %283 = vmatprep.subr.bf16.mxu0 0
      %284 = vmatpush1.bf16.msra.mxu0 %v268
      %285 = vmatprep.subr.bf16.mxu0 0
      %286 = vmatpush1.bf16.msra.mxu0 %v269
      %287 = vmatprep.subr.bf16.mxu0 0
      %288 = vmatpush1.bf16.msra.mxu0 %v270
      %289 = vmatprep.subr.bf16.mxu0 0
      %290 = vmatpush1.bf16.msra.mxu0 %v271
      %291 = vmatprep.subr.bf16.mxu0 0
      %292 = vmatpush1.bf16.msra.mxu0 0
      %293 = vmatprep.subr.bf16.mxu0 0
      %294 = vmatpush1.bf16.msra.mxu0 0
      %295 = vmatprep.subr.bf16.mxu0 0
      %296 = vmatpush1.bf16.msra.mxu0 0
      %297 = vmatprep.subr.bf16.mxu0 0
      %298 = vmatpush1.bf16.msra.mxu0 0
      %299 = vmatprep.subr.bf16.mxu0 0
      %300 = vmatpush1.bf16.msra.mxu0 0
      %301 = vmatprep.subr.bf16.mxu0 0
      %302 = vmatpush1.bf16.msra.mxu0 0
      %303 = vmatprep.subr.bf16.mxu0 0
      %304 = vmatpush1.bf16.msra.mxu0 0
      %305 = vmatprep.subr.bf16.mxu0 0
      %306 = vmatpush1.bf16.msra.mxu0 0
      %307 = vmatprep.subr.bf16.mxu0 0
      %308 = vmatpush1.bf16.msra.mxu0 0
      %309 = vmatprep.subr.bf16.mxu0 0
      %310 = vmatpush1.bf16.msra.mxu0 0
      %311 = vmatprep.subr.bf16.mxu0 0
      %312 = vmatpush1.bf16.msra.mxu0 0
      %313 = vmatprep.subr.bf16.mxu0 0
      %314 = vmatpush1.bf16.msra.mxu0 0
      %315 = vmatprep.mubr.bf16.mxu0 0
      %316 = vmatmul.mubr.bf16.gmra.mrb[0].mxu0 %v278
      %v317 = vpop.f32.mrb[0].mxu0
      %v318 = vadd.f32 0.0, %v317
      %v319 = vpop.f32.mrb[0].mxu0
      %v320 = vpop.f32.mrb[0].mxu0
      %v321 = vadd.f32 0.0, %v320
      %v322 = vpop.f32.mrb[0].mxu0
      %323 = vmatprep.mubr.bf16.mxu0 0
      %324 = vmatmul.mubr.bf16.gmra.mrb[0].mxu0 %v281
      %v325 = vpop.f32.mrb[0].mxu0
      %v326 = vadd.f32 0.0, %v325
      %v327 = vpop.f32.mrb[0].mxu0
      %v328 = vpop.f32.mrb[0].mxu0
      %v329 = vadd.f32 0.0, %v328
      %v330 = vpop.f32.mrb[0].mxu0
      %331 = vdwg.mxu0
      %v332 = vld [vmem:[%s2] sm:$0xff]
      %v333 = vld [vmem:[%s2 + $0x8] sm:$0xff]
      %v334 = vld [vmem:[%s2 + $0x10] sm:$0xff]
      %v335 = vld [vmem:[%s2 + $0x18] sm:$0xff]
      %337 = vset.pattern.permute.xlu0 0
      %338 = vperm.xlu0 %337, %v332
      %v339 = vpop.permute.xlu0 %338
      %342 = vset.pattern.permute.xlu0 0
      %343 = vperm.xlu0 %342, %v333
      %v344 = vpop.permute.xlu0 %343
      %347 = vset.pattern.permute.xlu0 0
      %348 = vperm.xlu0 %347, %v334
      %v349 = vpop.permute.xlu0 %348
      %352 = vset.pattern.permute.xlu0 0
      %353 = vperm.xlu0 %352, %v335
      %v354 = vpop.permute.xlu0 %353
      %v356 = vmul.f32 %v318, %v339
      %v357 = vmul.f32 %v321, %v344
      %v358 = vmul.f32 %v326, %v349
      %v359 = vmul.f32 %v329, %v354
      %v360 = vld [vmem:[%s3] sm:$0xff]
      %v361 = vld [vmem:[%s3 + $0x8] sm:$0xff]
      %v362 = vld [vmem:[%s3 + $0x10] sm:$0xff]
      %v363 = vld [vmem:[%s3 + $0x18] sm:$0xff]
      %365 = vset.pattern.permute.xlu0 0
      %366 = vperm.xlu0 %365, %v360
      %v367 = vpop.permute.xlu0 %366
      %370 = vset.pattern.permute.xlu0 0
      %371 = vperm.xlu0 %370, %v361
      %v372 = vpop.permute.xlu0 %371
      %375 = vset.pattern.permute.xlu0 0
      %376 = vperm.xlu0 %375, %v362
      %v377 = vpop.permute.xlu0 %376
      %380 = vset.pattern.permute.xlu0 0
      %381 = vperm.xlu0 %380, %v363
      %v382 = vpop.permute.xlu0 %381
      %v384 = vadd.f32 %v356, %v367
      %v385 = vadd.f32 %v357, %v372
      %v386 = vadd.f32 %v358, %v377
      %v387 = vadd.f32 %v359, %v382
      %vm388 = vcmask 130048
      %389 = vst.msk [vmem:[%s228] sm:$0xff] %vm388, %v384
      %390 = vst.msk [vmem:[%s228 + $0x8] sm:$0xff] %vm388, %v385
      %391 = vst.msk [vmem:[%s228 + $0x10] sm:$0xff] %vm388, %v386
      %392 = vst.msk [vmem:[%s228 + $0x18] sm:$0xff] %vm388, %v387
      %p393 = scmp.lt.s32.totalorder %s19, 1
      %s394 = scalar_select %p393, %s19, 1
      %p395 = scmp.lt.s32.totalorder %s20, 0
      %s396 = scalar_select %p395, %s20, 0
      %s397 = smul.addr %s394, 4
      %s398 = sadd.s32 %s396, %s397
      %s399 = smul.addr %s398, 8
      %s400 = scalar_lea.vmem %s4, %s399
      // Predicated region
      $region37: #{tpu_custom_call.1} parent=35 // pred_check
        %p401 = pneg %p138
      $region38: #{tpu_custom_call.1} parent=35 // pred_check_branch
        %403 = sbr.rel (%p401) target = $region40
      $region39: #{tpu_custom_call.1} parent=35 // pred_region
        _
      $region40: #{tpu_custom_call.1} parent=35 // pred_fallthru
        _
    $region36: #{tpu_custom_call.1} parent=5 // pred_fallthru
      _
    %p404 = scmp.le.s32.totalorder 2, %s10
    // Predicated region
    $region41: #{tpu_custom_call.1} parent=5 // pred_check
      %p405 = pneg %p404
    $region42: #{tpu_custom_call.1} parent=5 // pred_check_branch
      %407 = sbr.rel (%p405) target = $region44
    $region43: #{tpu_custom_call.1} parent=5 // pred_region
      %s408 = ssub.s32 %s10, 2
      // Predicated region
      $region45: #{tpu_custom_call.1} parent=43 // pred_check
        %p409 = pneg %p144
      $region46: #{tpu_custom_call.1} parent=43 // pred_check_branch
        %411 = sbr.rel (%p409) target = $region48
      $region47: #{tpu_custom_call.1} parent=43 // pred_region
        %p412 = scmp.lt.s32.totalorder %s21, 1
        %s413 = scalar_select %p412, %s21, 1
        %p414 = scmp.lt.s32.totalorder %s22, 0
        %s415 = scalar_select %p414, %s22, 0
        %s416 = smul.addr %s413, 4
        %s417 = sadd.s32 %s415, %s416
        %s418 = smul.addr %s417, 8
        %s419 = scalar_lea.vmem %s4, %s418
      $region48: #{tpu_custom_call.1} parent=43 // pred_fallthru
        _
    $region44: #{tpu_custom_call.1} parent=5 // pred_fallthru
      _
  $region6: #{tpu_custom_call.1} parent=0 // loop_footer
    %s14 = sadd.s32 1, %s10
  $region7: #{tpu_custom_call.1} parent=0 // loop_footer_branch
    %9 = sbr.rel target = $region3
  $region8: #{tpu_custom_call.1} parent=0 // loop_exit
    _

</llo_original>
